<compile_context>
chip_gen: v7x
topology: tpu7x:2x2x1
jax: 0.10.0
libtpu: 0.0.40
codegen_flags: <defaults>
</compile_context>

<pallas_src>
import jax
import jax.numpy as jnp
from jax.experimental import pallas as pl
from jax.experimental.pallas import tpu as pltpu


def _round_up(n, m):
    return ((n + m - 1) // m) * m


def mia_kernel(xin_ref,
               w_in_ref, b_in_ref,
               w_mid_ref, b_mid_ref,
               w_ot_ref, w_ob_ref, b_out_ref,
               w_cmb_ref, b_cmb_ref,
               out_ref):
    f32 = jnp.float32
    wdt = w_in_ref.dtype          # f32 or bf16 (matmul operand dtype)

    xin = xin_ref[...]            # (TILE_B, F+C), already cast to wdt in wrapper

    # Layer A: fused first layers of both branches (block-diagonal weight).
    hg = jnp.dot(xin, w_in_ref[...], preferred_element_type=f32) + b_in_ref[...]
    hg = jnp.maximum(hg, 0.0)                       # (TILE_B, 768) = [h1(512) | g1(256)]
    h1 = hg[:, :512]
    g1 = hg[:, 512:]

    # Layer B: features branch 512 -> 100 (zero-padded to 128 lanes).
    h2 = jnp.dot(h1.astype(wdt), w_mid_ref[...],
                 preferred_element_type=f32) + b_mid_ref[...]
    h2 = jnp.maximum(h2, 0.0)                       # (TILE_B, 128)

    # Layer C: fused last layers, split block-diagonally to avoid an in-kernel
    # concat: cols 0:64 <- w3 (features), cols 64:128 <- wl2 (labels).
    o = (jnp.dot(h2.astype(wdt), w_ot_ref[...], preferred_element_type=f32)
         + jnp.dot(g1.astype(wdt), w_ob_ref[...], preferred_element_type=f32)
         + b_out_ref[...])
    o = jnp.maximum(o, 0.0)                         # (TILE_B, 128) = [out_x1 | out_l]

    # Combine Linear(128, 1): full-128-lane VPU multiply + XLU lane reduction
    # (no N=1 MXU matmul, no sub-128 lane slices).
    logit = jnp.sum(o * w_cmb_ref[...], axis=-1, keepdims=True) + b_cmb_ref[...]

    # Sigmoid: exp on the EUP, exact reciprocal (stays within 1e-5 of ref).
    out_ref[...] = pl.reciprocal(1.0 + jnp.exp(-logit), approx=False)


def mia_forward(x, label, kparams, *, tile_b=1024):
    """Fused MIA forward. kparams comes from prepare_kernel_params()."""
    B = x.shape[0]

    # Single streamed input: cat(x, label) along features (lane) dim.
    xin = jnp.concatenate([x, label], axis=1).astype(kparams["w_in"].dtype)
    FC = xin.shape[1]

    # Tile selection:
    #  * never over-pad tiny batches (cap at round_up(B, 8)),
    #  * prefer >=2 grid steps when the batch allows (cap at round_up(ceil(B/2), 128))
    #    so v7x's two TensorCores both get work under dimension_semantics=("parallel",).
    tile_b = max(8, min(tile_b, _round_up(B, 8), _round_up(pl.cdiv(B, 2), 128)))
    b_pad = _round_up(B, tile_b)
    if b_pad != B:
        xin = jnp.pad(xin, ((0, b_pad - B), (0, 0)))

    weights = (kparams["w_in"], kparams["b_in"],
               kparams["w_mid"], kparams["b_mid"],
               kparams["w_ot"], kparams["w_ob"], kparams["b_out"],
               kparams["w_cmb"], kparams["b_cmb"])

    def resident_spec(w):
        # Constant block index -> parameter DMA'd once, VMEM-resident across tiles.
        return pl.BlockSpec(w.shape, lambda i: (0, 0))

    out = pl.pallas_call(
        mia_kernel,
        out_shape=jax.ShapeDtypeStruct((b_pad, 1), jnp.float32),
        grid=(b_pad // tile_b,),
        in_specs=[pl.BlockSpec((tile_b, FC), lambda i: (i, 0))]
                 + [resident_spec(w) for w in weights],
        out_specs=pl.BlockSpec((tile_b, 1), lambda i: (i, 0)),
        compiler_params=pltpu.CompilerParams(
            dimension_semantics=("parallel",),
            vmem_limit_bytes=64 << 20),
    )(xin, *weights)
    return out[:B]


# -------------- parameter construction (matches the PyTorch module) --------------

def xavier_uniform(key, fan_in, fan_out):
    bound = jnp.sqrt(6.0 / (fan_in + fan_out))
    # stored as (in, out): transpose of PyTorch's (out, in) weight
    return jax.random.uniform(key, (fan_in, fan_out), jnp.float32, -bound, bound)


def default_bias(key, fan_in, fan_out):
    # PyTorch nn.Linear default bias init: U(-1/sqrt(fan_in), 1/sqrt(fan_in))
    bound = 1.0 / jnp.sqrt(jnp.float32(fan_in))
    return jax.random.uniform(key, (1, fan_out), jnp.float32, -bound, bound)


def make_params(key, num_classes, num_features):
    keys = jax.random.split(key, 12)
    dims_feat = [(num_features, 512), (512, 100), (100, 64)]
    dims_lab = [(num_classes, 256), (256, 64)]
    p = {}
    k = 0
    for i, (fi, fo) in enumerate(dims_feat, start=1):
        p[f"w{i}"] = xavier_uniform(keys[k], fi, fo); k += 1
        p[f"b{i}"] = default_bias(keys[k], fi, fo); k += 1
    for i, (fi, fo) in enumerate(dims_lab, start=1):
        p[f"wl{i}"] = xavier_uniform(keys[k], fi, fo); k += 1
        p[f"bl{i}"] = default_bias(keys[k], fi, fo); k += 1
    p["wc"] = xavier_uniform(keys[k], 128, 1); k += 1
    p["bc"] = default_bias(keys[k], 128, 1); k += 1
    return p


def prepare_kernel_params(params, *, use_bf16=False):
    """One-time prep: build block-diagonal fused weights and pad the 100-wide
    hidden layer to 128 lanes.  Zero padding / zero blocks only -> the f32
    path is numerically exact vs the unfused reference.  use_bf16=True casts
    matmul weights to bfloat16 (opt-in; f32 accumulation kept)."""
    f32 = jnp.float32
    F = params["w1"].shape[0]
    C = params["wl1"].shape[0]

    # Layer A: blockdiag(w1 (F,512), wl1 (C,256)) -> (F+C, 768)
    w_in = jnp.zeros((F + C, 512 + 256), f32)
    w_in = w_in.at[:F, :512].set(params["w1"])
    w_in = w_in.at[F:, 512:].set(params["wl1"])
    b_in = jnp.concatenate([params["b1"], params["bl1"]], axis=1)      # (1, 768)

    # Layer B: features 512 -> 100, padded to 128 output lanes.
    hidden = params["w2"].shape[1]                                      # 100
    pad = _round_up(hidden, 128) - hidden                               # 28
    w_mid = jnp.pad(params["w2"], ((0, 0), (0, pad)))                   # (512, 128)
    b_mid = jnp.pad(params["b2"], ((0, 0), (0, pad)))                   # (1, 128)

    # Layer C: blockdiag(w3_pad (128,64), wl2 (256,64)) -> (384,128), stored
    # split so the kernel computes h2 @ w_ot + g1 @ w_ob (no in-kernel concat).
    w3_pad = jnp.pad(params["w3"], ((0, pad), (0, 0)))                  # (128, 64)
    w_ot = jnp.pad(w3_pad, ((0, 0), (0, 64)))                           # (128, 128): cols 0:64 = w3
    w_ob = jnp.pad(params["wl2"], ((0, 0), (64, 0)))                    # (256, 128): cols 64:128 = wl2
    b_out = jnp.concatenate([params["b3"], params["bl2"]], axis=1)      # (1, 128)

    w_cmb = params["wc"].T                                              # (1, 128)
    b_cmb = params["bc"]                                                # (1, 1)

    wdt = jnp.bfloat16 if use_bf16 else f32
    return {
        "w_in": w_in.astype(wdt), "b_in": b_in,
        "w_mid": w_mid.astype(wdt), "b_mid": b_mid,
        "w_ot": w_ot.astype(wdt), "w_ob": w_ob.astype(wdt), "b_out": b_out,
        "w_cmb": w_cmb, "b_cmb": b_cmb,
    }


def mia_reference(x, label, p):
    def lin(a, w, b):
        return a @ w + b
    h = jax.nn.relu(lin(x, p["w1"], p["b1"]))
    h = jax.nn.relu(lin(h, p["w2"], p["b2"]))
    out_x1 = jax.nn.relu(lin(h, p["w3"], p["b3"]))
    g = jax.nn.relu(lin(label, p["wl1"], p["bl1"]))
    out_l = jax.nn.relu(lin(g, p["wl2"], p["bl2"]))
    logit = jnp.concatenate([out_x1, out_l], axis=1) @ p["wc"] + p["bc"]
    return jax.nn.sigmoid(logit)


if __name__ == "__main__":
    num_classes = 4
    num_features = 4   # the module defaults num_features to num_classes
    key = jax.random.PRNGKey(0)
    k_params, k_x, k_lab, k_x2, k_lab2 = jax.random.split(key, 5)

    params = make_params(k_params, num_classes, num_features)
    kparams = prepare_kernel_params(params)

    # small batch: single tile, no padding waste
    batch = 8
    x = jax.random.normal(k_x, (batch, num_features), jnp.float32)
    lab_idx = jax.random.randint(k_lab, (batch,), 0, num_classes)
    label = jax.nn.one_hot(lab_idx, num_classes, dtype=jnp.float32)
    out = jax.block_until_ready(mia_forward(x, label, kparams))
    ref = mia_reference(x, label, params)
    assert out.shape == (batch, 1)
    assert jnp.allclose(out, ref, atol=1e-5, rtol=1e-5)

    # larger, non-multiple batch: exercises the >=2-step parallel grid + padding
    batch2 = 300
    x2 = jax.random.normal(k_x2, (batch2, num_features), jnp.float32)
    lab_idx2 = jax.random.randint(k_lab2, (batch2,), 0, num_classes)
    label2 = jax.nn.one_hot(lab_idx2, num_classes, dtype=jnp.float32)
    out2 = jax.block_until_ready(mia_forward(x2, label2, kparams))
    ref2 = mia_reference(x2, label2, params)
    assert out2.shape == (batch2, 1)
    assert jnp.allclose(out2, ref2, atol=1e-5, rtol=1e-5)

    # optional bf16 matmul path (opt-in; f32 accumulation, looser tolerance)
    kparams_bf16 = prepare_kernel_params(params, use_bf16=True)
    out3 = jax.block_until_ready(mia_forward(x2, label2, kparams_bf16))
    assert out3.shape == (batch2, 1)
    assert jnp.allclose(out3, ref2, atol=5e-2)

    print("KERNEL_OK")
</pallas_src>

<mosaic_0001>
module attributes {stable_mosaic.version = 11 : i64} {
  func.func @mia_kernel(%arg0: i32, %arg1: memref<8x8xf32, #tpu.memory_space<vmem>>, %arg2: memref<8x768xf32, #tpu.memory_space<vmem>>, %arg3: memref<1x768xf32, #tpu.memory_space<vmem>>, %arg4: memref<512x128xf32, #tpu.memory_space<vmem>>, %arg5: memref<1x128xf32, #tpu.memory_space<vmem>>, %arg6: memref<128x128xf32, #tpu.memory_space<vmem>>, %arg7: memref<256x128xf32, #tpu.memory_space<vmem>>, %arg8: memref<1x128xf32, #tpu.memory_space<vmem>>, %arg9: memref<1x128xf32, #tpu.memory_space<vmem>>, %arg10: memref<1x1xf32, #tpu.memory_space<vmem>>, %arg11: memref<8x1xf32, #tpu.memory_space<vmem>>) attributes {dimension_semantics = [#tpu.dimension_semantics<parallel>], iteration_bounds = array<i64: 1>, scalar_prefetch = 0 : i64, scratch_operands = 0 : i64, tpu.core_type = #tpu.core_type<tc>, window_params = [{transform_indices = @transform_0, window_bounds = array<i64: 8, 8>}, {pipeline_mode = #tpu.pipeline_mode<synchronous>, transform_indices = @transform_1, window_bounds = array<i64: 8, 768>}, {pipeline_mode = #tpu.pipeline_mode<synchronous>, transform_indices = @transform_2, window_bounds = array<i64: 1, 768>}, {pipeline_mode = #tpu.pipeline_mode<synchronous>, transform_indices = @transform_3, window_bounds = array<i64: 512, 128>}, {pipeline_mode = #tpu.pipeline_mode<synchronous>, transform_indices = @transform_4, window_bounds = array<i64: 1, 128>}, {pipeline_mode = #tpu.pipeline_mode<synchronous>, transform_indices = @transform_5, window_bounds = array<i64: 128, 128>}, {pipeline_mode = #tpu.pipeline_mode<synchronous>, transform_indices = @transform_6, window_bounds = array<i64: 256, 128>}, {pipeline_mode = #tpu.pipeline_mode<synchronous>, transform_indices = @transform_7, window_bounds = array<i64: 1, 128>}, {pipeline_mode = #tpu.pipeline_mode<synchronous>, transform_indices = @transform_8, window_bounds = array<i64: 1, 128>}, {pipeline_mode = #tpu.pipeline_mode<synchronous>, transform_indices = @transform_9, window_bounds = array<i64: 1, 1>}, {transform_indices = @transform_10, window_bounds = array<i64: 8, 1>}]} {
    %c0 = arith.constant 0 : index
    %c0_0 = arith.constant 0 : index
    %0 = vector.load %arg1[%c0, %c0_0] : memref<8x8xf32, #tpu.memory_space<vmem>>, vector<8x8xf32>
    %c0_1 = arith.constant 0 : index
    %c0_2 = arith.constant 0 : index
    %1 = vector.load %arg2[%c0_1, %c0_2] : memref<8x768xf32, #tpu.memory_space<vmem>>, vector<8x768xf32>
    %cst = arith.constant dense<0.000000e+00> : vector<8x768xf32>
    %2 = tpu.matmul %0, %1, %cst {dimension_numbers = #tpu.dot_dimension_numbers<[1], [0], [0], [1], [0, 0, 1, 1], [], []>} : vector<8x8xf32>, vector<8x768xf32>, vector<8x768xf32> -> vector<8x768xf32>
    %c0_3 = arith.constant 0 : index
    %c0_4 = arith.constant 0 : index
    %3 = vector.load %arg3[%c0_3, %c0_4] : memref<1x768xf32, #tpu.memory_space<vmem>>, vector<1x768xf32>
    %4 = vector.broadcast %3 : vector<1x768xf32> to vector<8x768xf32>
    %5 = arith.addf %2, %4 : vector<8x768xf32>
    %cst_5 = arith.constant 0.000000e+00 : f32
    %6 = vector.broadcast %cst_5 : f32 to vector<8x768xf32>
    %7 = arith.maximumf %5, %6 : vector<8x768xf32>
    %8 = vector.extract_strided_slice %7 {offsets = [0, 0], sizes = [8, 512], strides = [1, 1]} : vector<8x768xf32> to vector<8x512xf32>
    %9 = vector.extract_strided_slice %7 {offsets = [0, 512], sizes = [8, 256], strides = [1, 1]} : vector<8x768xf32> to vector<8x256xf32>
    %c0_6 = arith.constant 0 : index
    %c0_7 = arith.constant 0 : index
    %10 = vector.load %arg4[%c0_6, %c0_7] : memref<512x128xf32, #tpu.memory_space<vmem>>, vector<512x128xf32>
    %cst_8 = arith.constant dense<0.000000e+00> : vector<8x128xf32>
    %11 = tpu.matmul %8, %10, %cst_8 {dimension_numbers = #tpu.dot_dimension_numbers<[1], [0], [0], [1], [0, 0, 1, 1], [], []>} : vector<8x512xf32>, vector<512x128xf32>, vector<8x128xf32> -> vector<8x128xf32>
    %c0_9 = arith.constant 0 : index
    %c0_10 = arith.constant 0 : index
    %12 = vector.load %arg5[%c0_9, %c0_10] : memref<1x128xf32, #tpu.memory_space<vmem>>, vector<1x128xf32>
    %13 = vector.broadcast %12 : vector<1x128xf32> to vector<8x128xf32>
    %14 = arith.addf %11, %13 : vector<8x128xf32>
    %cst_11 = arith.constant 0.000000e+00 : f32
    %15 = vector.broadcast %cst_11 : f32 to vector<8x128xf32>
    %16 = arith.maximumf %14, %15 : vector<8x128xf32>
    %c0_12 = arith.constant 0 : index
    %c0_13 = arith.constant 0 : index
    %17 = vector.load %arg6[%c0_12, %c0_13] : memref<128x128xf32, #tpu.memory_space<vmem>>, vector<128x128xf32>
    %cst_14 = arith.constant dense<0.000000e+00> : vector<8x128xf32>
    %18 = tpu.matmul %16, %17, %cst_14 {dimension_numbers = #tpu.dot_dimension_numbers<[1], [0], [0], [1], [0, 0, 1, 1], [], []>} : vector<8x128xf32>, vector<128x128xf32>, vector<8x128xf32> -> vector<8x128xf32>
    %c0_15 = arith.constant 0 : index
    %c0_16 = arith.constant 0 : index
    %19 = vector.load %arg7[%c0_15, %c0_16] : memref<256x128xf32, #tpu.memory_space<vmem>>, vector<256x128xf32>
    %cst_17 = arith.constant dense<0.000000e+00> : vector<8x128xf32>
    %20 = tpu.matmul %9, %19, %cst_17 {dimension_numbers = #tpu.dot_dimension_numbers<[1], [0], [0], [1], [0, 0, 1, 1], [], []>} : vector<8x256xf32>, vector<256x128xf32>, vector<8x128xf32> -> vector<8x128xf32>
    %21 = arith.addf %18, %20 : vector<8x128xf32>
    %c0_18 = arith.constant 0 : index
    %c0_19 = arith.constant 0 : index
    %22 = vector.load %arg8[%c0_18, %c0_19] : memref<1x128xf32, #tpu.memory_space<vmem>>, vector<1x128xf32>
    %23 = vector.broadcast %22 : vector<1x128xf32> to vector<8x128xf32>
    %24 = arith.addf %21, %23 : vector<8x128xf32>
    %cst_20 = arith.constant 0.000000e+00 : f32
    %25 = vector.broadcast %cst_20 : f32 to vector<8x128xf32>
    %26 = arith.maximumf %24, %25 : vector<8x128xf32>
    %c0_21 = arith.constant 0 : index
    %c0_22 = arith.constant 0 : index
    %27 = vector.load %arg9[%c0_21, %c0_22] : memref<1x128xf32, #tpu.memory_space<vmem>>, vector<1x128xf32>
    %28 = vector.broadcast %27 : vector<1x128xf32> to vector<8x128xf32>
    %29 = arith.mulf %26, %28 : vector<8x128xf32>
    %cst_23 = arith.constant dense<0.000000e+00> : vector<8xf32>
    %30 = vector.multi_reduction <add>, %29, %cst_23 [1] : vector<8x128xf32> to vector<8xf32>
    %31 = vector.shape_cast %30 : vector<8xf32> to vector<8x1xf32>
    %c0_24 = arith.constant 0 : index
    %c0_25 = arith.constant 0 : index
    %32 = vector.load %arg10[%c0_24, %c0_25] : memref<1x1xf32, #tpu.memory_space<vmem>>, vector<1x1xf32>
    %33 = vector.broadcast %32 : vector<1x1xf32> to vector<8x1xf32>
    %34 = arith.addf %31, %33 : vector<8x1xf32>
    %cst_26 = arith.constant 0.000000e+00 : f32
    %35 = vector.broadcast %cst_26 : f32 to vector<8x1xf32>
    %36 = arith.subf %35, %34 : vector<8x1xf32>
    %37 = math.exp %36 : vector<8x1xf32>
    %cst_27 = arith.constant 1.000000e+00 : f32
    %38 = vector.broadcast %cst_27 : f32 to vector<8x1xf32>
    %39 = arith.addf %38, %37 : vector<8x1xf32>
    %40 = tpu.reciprocal %39 : vector<8x1xf32> -> vector<8x1xf32>
    %c0_28 = arith.constant 0 : index
    %c0_29 = arith.constant 0 : index
    %41 = vector.load %arg11[%c0_28, %c0_29] : memref<8x1xf32, #tpu.memory_space<vmem>>, vector<8x1xf32>
    tpu.vector_store %arg11[%c0_28, %c0_29], %40 {strides = array<i32>} : memref<8x1xf32, #tpu.memory_space<vmem>>, vector<8x1xf32>,
    return
  }
  func.func @transform_0(%arg0: i32) -> (i32, i32) {
    %c0_i32 = arith.constant 0 : i32
    %c0_i32_0 = arith.constant 0 : i32
    return %arg0, %c0_i32 : i32, i32
  }
  func.func @transform_1(%arg0: i32) -> (i32, i32) {
    %c0_i32 = arith.constant 0 : i32
    %c0_i32_0 = arith.constant 0 : i32
    %c0_i32_1 = arith.constant 0 : i32
    return %c0_i32, %c0_i32_0 : i32, i32
  }
  func.func @transform_2(%arg0: i32) -> (i32, i32) {
    %c0_i32 = arith.constant 0 : i32
    %c0_i32_0 = arith.constant 0 : i32
    %c0_i32_1 = arith.constant 0 : i32
    return %c0_i32, %c0_i32_0 : i32, i32
  }
  func.func @transform_3(%arg0: i32) -> (i32, i32) {
    %c0_i32 = arith.constant 0 : i32
    %c0_i32_0 = arith.constant 0 : i32
    %c0_i32_1 = arith.constant 0 : i32
    return %c0_i32, %c0_i32_0 : i32, i32
  }
  func.func @transform_4(%arg0: i32) -> (i32, i32) {
    %c0_i32 = arith.constant 0 : i32
    %c0_i32_0 = arith.constant 0 : i32
    %c0_i32_1 = arith.constant 0 : i32
    return %c0_i32, %c0_i32_0 : i32, i32
  }
  func.func @transform_5(%arg0: i32) -> (i32, i32) {
    %c0_i32 = arith.constant 0 : i32
    %c0_i32_0 = arith.constant 0 : i32
    %c0_i32_1 = arith.constant 0 : i32
    return %c0_i32, %c0_i32_0 : i32, i32
  }
  func.func @transform_6(%arg0: i32) -> (i32, i32) {
    %c0_i32 = arith.constant 0 : i32
    %c0_i32_0 = arith.constant 0 : i32
    %c0_i32_1 = arith.constant 0 : i32
    return %c0_i32, %c0_i32_0 : i32, i32
  }
  func.func @transform_7(%arg0: i32) -> (i32, i32) {
    %c0_i32 = arith.constant 0 : i32
    %c0_i32_0 = arith.constant 0 : i32
    %c0_i32_1 = arith.constant 0 : i32
    return %c0_i32, %c0_i32_0 : i32, i32
  }
  func.func @transform_8(%arg0: i32) -> (i32, i32) {
    %c0_i32 = arith.constant 0 : i32
    %c0_i32_0 = arith.constant 0 : i32
    %c0_i32_1 = arith.constant 0 : i32
    return %c0_i32, %c0_i32_0 : i32, i32
  }
  func.func @transform_9(%arg0: i32) -> (i32, i32) {
    %c0_i32 = arith.constant 0 : i32
    %c0_i32_0 = arith.constant 0 : i32
    %c0_i32_1 = arith.constant 0 : i32
    return %c0_i32, %c0_i32_0 : i32, i32
  }
  func.func @transform_10(%arg0: i32) -> (i32, i32) {
    %c0_i32 = arith.constant 0 : i32
    %c0_i32_0 = arith.constant 0 : i32
    return %arg0, %c0_i32 : i32, i32
  }
}

</mosaic_0001>

<llo_original>
// kernel: tpu_custom_call.1
$region0: #{tpu_custom_call.1}
  #allocation0 [shape = 'u32[]', space=smem, size = 0x4, offset = 0x4, fixed_abs, tag = 'smem constant byte address 0x4 - core index']
  #allocation1 [shape = 'u32[144,128]{1,0:T(1,128)}', space=vmem, size = 0x12000, scoped, tag = 'internal scratch']
  #allocation2 [shape = 'f32[1,1]{1,0:T(1,128)S(1)}', space=vmem, size = 0x200, scoped, tag = 'scoped memory for tpu_custom_call.1']
  %s0 = inlined_call_operand.hbm [shape: f32[8,8], index: 0, kind: input, shape index: {}]
  %s1 = inlined_call_operand.hbm [shape: f32[8,768], index: 1, kind: input, shape index: {}]
  %s2 = inlined_call_operand.hbm [shape: f32[1,768], index: 2, kind: input, shape index: {}]
  %s3 = inlined_call_operand.hbm [shape: f32[512,128], index: 3, kind: input, shape index: {}]
  %s4 = inlined_call_operand.hbm [shape: f32[1,128], index: 4, kind: input, shape index: {}]
  %s5 = inlined_call_operand.hbm [shape: f32[128,128], index: 5, kind: input, shape index: {}]
  %s6 = inlined_call_operand.hbm [shape: f32[256,128], index: 6, kind: input, shape index: {}]
  %s7 = inlined_call_operand.hbm [shape: f32[1,128], index: 7, kind: input, shape index: {}]
  %s8 = inlined_call_operand.hbm [shape: f32[1,128], index: 8, kind: input, shape index: {}]
  %s9 = inlined_call_operand.<no memory space> [shape: f32[1,1], index: 9, kind: input, shape index: {}]
  %s10 = inlined_call_operand.hbm [shape: f32[8,1], index: 10, kind: output, shape index: {}]
  %s11 = sld [smem:[#allocation0]]
  $region86: #{tpu_custom_call.1} parent=0
    _
  %s13 = ssub.s32 1, %s11
  %s14 = scalar_select 0, %s13, %s11
  %v15 = vstv %s9
  %16 = vst [vmem:[#allocation2] sm:$0x1] %v15
  $region1: #{tpu_custom_call.1} parent=0
    #allocation3 [shape = 'u8[4096]{0}', space=vmem, size = 0x1000, scoped, tag = 'input window, operand 0, single buffered']
    #allocation4 [shape = 's32[1]{0}', space=sflag, size = 0x4, scoped, tag = 'scoped memory for tpu_custom_call.1']
    #allocation5 [shape = 's32[1]{0}', space=sflag, size = 0x4, scoped, tag = 'scoped memory for tpu_custom_call.1']
    #allocation6 [shape = 'u8[24576]{0}', space=vmem, size = 0x6000, scoped, tag = 'input window, operand 1, single buffered']
    #allocation7 [shape = 's32[1]{0}', space=sflag, size = 0x4, scoped, tag = 'scoped memory for tpu_custom_call.1']
    #allocation8 [shape = 'u8[3072]{0}', space=vmem, size = 0xc00, scoped, tag = 'input window, operand 2, single buffered']
    #allocation9 [shape = 'u8[262144]{0}', space=vmem, size = 0x40000, scoped, tag = 'input window, operand 3, single buffered']
    #allocation10 [shape = 's32[1]{0}', space=sflag, size = 0x4, scoped, tag = 'scoped memory for tpu_custom_call.1']
    #allocation11 [shape = 'u8[512]{0}', space=vmem, size = 0x400, scoped, tag = 'input window, operand 4, single buffered']
    #allocation12 [shape = 'u8[65536]{0}', space=vmem, size = 0x10000, scoped, tag = 'input window, operand 5, single buffered']
    #allocation13 [shape = 's32[1]{0}', space=sflag, size = 0x4, scoped, tag = 'scoped memory for tpu_custom_call.1']
    #allocation14 [shape = 'u8[131072]{0}', space=vmem, size = 0x20000, scoped, tag = 'input window, operand 6, single buffered']
    #allocation15 [shape = 'u8[512]{0}', space=vmem, size = 0x400, scoped, tag = 'input window, operand 7, single buffered']
    #allocation16 [shape = 's32[1]{0}', space=sflag, size = 0x4, scoped, tag = 'scoped memory for tpu_custom_call.1']
    #allocation17 [shape = 'u8[512]{0}', space=vmem, size = 0x400, scoped, tag = 'input window, operand 8, single buffered']
    #allocation18 [shape = 'u8[4096]{0}', space=vmem, size = 0x1000, scoped, tag = 'output window, operand 0, single buffered']
    %17 = vsyncpa [#allocation4], 0
    %18 = vsyncpa [#allocation7], 0
    %19 = vsyncpa [#allocation10], 0
    %20 = vsyncpa [#allocation13], 0
    %21 = vsyncpa [#allocation16], 0
    %22 = vsyncpa [#allocation5], 0
    // Predicated region
    $region2: #{tpu_custom_call.1} parent=1 // pred_check
      _
    $region3: #{tpu_custom_call.1} parent=1 // pred_check_branch
      %24 = sbr.rel (0) target = $region5
    $region4: #{tpu_custom_call.1} parent=1 // pred_region
      %s26 = ssub.s32 128, 128
      %27 = vsyncadd [#allocation4], %s26
      %s29 = sshll.u32 [#allocation3], 4
      %s30 = int_to_ptr.vmem [resolvable:$true] %s29
      %32 = dma.hbm_to_vmem [thread:$0]  %s0, 128, %s30, [#allocation4]
    $region5: #{tpu_custom_call.1} parent=1 // pred_fallthru
      _
    // Predicated region
    $region6: #{tpu_custom_call.1} parent=1 // pred_check
      _
    $region7: #{tpu_custom_call.1} parent=1 // pred_check_branch
      %34 = sbr.rel (0) target = $region9
    $region8: #{tpu_custom_call.1} parent=1 // pred_region
      %s36 = ssub.s32 768, 768
      %37 = vsyncadd [#allocation7], %s36
      %s39 = sshll.u32 [#allocation6], 4
      %s40 = int_to_ptr.vmem [resolvable:$true] %s39
      %42 = dma.hbm_to_vmem [thread:$0]  %s1, 768, %s40, [#allocation7]
    $region9: #{tpu_custom_call.1} parent=1 // pred_fallthru
      _
    // Predicated region
    $region10: #{tpu_custom_call.1} parent=1 // pred_check
      _
    $region11: #{tpu_custom_call.1} parent=1 // pred_check_branch
      %44 = sbr.rel (0) target = $region13
    $region12: #{tpu_custom_call.1} parent=1 // pred_region
      %s46 = ssub.s32 96, 96
      %47 = vsyncadd [#allocation7], %s46
      %s49 = sshll.u32 [#allocation8], 4
      %s50 = int_to_ptr.vmem [resolvable:$true] %s49
      %52 = dma.hbm_to_vmem [thread:$0]  %s2, 96, %s50, [#allocation7]
    $region13: #{tpu_custom_call.1} parent=1 // pred_fallthru
      _
    // Predicated region
    $region14: #{tpu_custom_call.1} parent=1 // pred_check
      _
    $region15: #{tpu_custom_call.1} parent=1 // pred_check_branch
      %54 = sbr.rel (0) target = $region17
    $region16: #{tpu_custom_call.1} parent=1 // pred_region
      %s56 = ssub.s32 8192, 8192
      %57 = vsyncadd [#allocation10], %s56
      %s58 = sshll.u32 [#allocation9], 4
      %s59 = int_to_ptr.vmem [resolvable:$true] %s58
      %64 = dma.hbm_to_vmem [thread:$0]  %s3, 8192, %s59, [#allocation10], 128, 128, 8
    $region17: #{tpu_custom_call.1} parent=1 // pred_fallthru
      _
    // Predicated region
    $region18: #{tpu_custom_call.1} parent=1 // pred_check
      _
    $region19: #{tpu_custom_call.1} parent=1 // pred_check_branch
      %66 = sbr.rel (0) target = $region21
    $region20: #{tpu_custom_call.1} parent=1 // pred_region
      %s68 = ssub.s32 16, 16
      %69 = vsyncadd [#allocation10], %s68
      %s71 = sshll.u32 [#allocation11], 4
      %s72 = int_to_ptr.vmem [resolvable:$true] %s71
      %74 = dma.hbm_to_vmem [thread:$0]  %s4, 16, %s72, [#allocation10]
    $region21: #{tpu_custom_call.1} parent=1 // pred_fallthru
      _
    // Predicated region
    $region22: #{tpu_custom_call.1} parent=1 // pred_check
      _
    $region23: #{tpu_custom_call.1} parent=1 // pred_check_branch
      %76 = sbr.rel (0) target = $region25
    $region24: #{tpu_custom_call.1} parent=1 // pred_region
      %s78 = ssub.s32 2048, 2048
      %79 = vsyncadd [#allocation13], %s78
      %s80 = sshll.u32 [#allocation12], 4
      %s81 = int_to_ptr.vmem [resolvable:$true] %s80
      %86 = dma.hbm_to_vmem [thread:$0]  %s5, 2048, %s81, [#allocation13], 128, 128, 8
    $region25: #{tpu_custom_call.1} parent=1 // pred_fallthru
      _
    // Predicated region
    $region26: #{tpu_custom_call.1} parent=1 // pred_check
      _
    $region27: #{tpu_custom_call.1} parent=1 // pred_check_branch
      %88 = sbr.rel (0) target = $region29
    $region28: #{tpu_custom_call.1} parent=1 // pred_region
      %s90 = ssub.s32 4096, 4096
      %91 = vsyncadd [#allocation13], %s90
      %s92 = sshll.u32 [#allocation14], 4
      %s93 = int_to_ptr.vmem [resolvable:$true] %s92
      %98 = dma.hbm_to_vmem [thread:$0]  %s6, 4096, %s93, [#allocation13], 128, 128, 8
    $region29: #{tpu_custom_call.1} parent=1 // pred_fallthru
      _
    // Predicated region
    $region30: #{tpu_custom_call.1} parent=1 // pred_check
      _
    $region31: #{tpu_custom_call.1} parent=1 // pred_check_branch
      %100 = sbr.rel (0) target = $region33
    $region32: #{tpu_custom_call.1} parent=1 // pred_region
      %s102 = ssub.s32 16, 16
      %103 = vsyncadd [#allocation16], %s102
      %s105 = sshll.u32 [#allocation15], 4
      %s106 = int_to_ptr.vmem [resolvable:$true] %s105
      %108 = dma.hbm_to_vmem [thread:$0]  %s7, 16, %s106, [#allocation16]
    $region33: #{tpu_custom_call.1} parent=1 // pred_fallthru
      _
    // Predicated region
    $region34: #{tpu_custom_call.1} parent=1 // pred_check
      _
    $region35: #{tpu_custom_call.1} parent=1 // pred_check_branch
      %110 = sbr.rel (0) target = $region37
    $region36: #{tpu_custom_call.1} parent=1 // pred_region
      %s112 = ssub.s32 16, 16
      %113 = vsyncadd [#allocation16], %s112
      %s115 = sshll.u32 [#allocation17], 4
      %s116 = int_to_ptr.vmem [resolvable:$true] %s115
      %118 = dma.hbm_to_vmem [thread:$0]  %s8, 16, %s116, [#allocation16]
    $region37: #{tpu_custom_call.1} parent=1 // pred_fallthru
      _
    // Predicated region
    $region38: #{tpu_custom_call.1} parent=1 // pred_check
      _
    $region39: #{tpu_custom_call.1} parent=1 // pred_check_branch
      %120 = sbr.rel (0) target = $region41
    $region40: #{tpu_custom_call.1} parent=1 // pred_region
      _
    $region41: #{tpu_custom_call.1} parent=1 // pred_fallthru
      _
    // Predicated region
    $region42: #{tpu_custom_call.1} parent=1 // pred_check
      _
    $region43: #{tpu_custom_call.1} parent=1 // pred_check_branch
      %122 = sbr.rel (0) target = $region45
    $region44: #{tpu_custom_call.1} parent=1 // pred_region
      %123 = dma.done [#allocation4], 128
    $region45: #{tpu_custom_call.1} parent=1 // pred_fallthru
      _
    // Predicated region
    $region46: #{tpu_custom_call.1} parent=1 // pred_check
      _
    $region47: #{tpu_custom_call.1} parent=1 // pred_check_branch
      %125 = sbr.rel (0) target = $region49
    $region48: #{tpu_custom_call.1} parent=1 // pred_region
      %126 = dma.done [#allocation7], 768
    $region49: #{tpu_custom_call.1} parent=1 // pred_fallthru
      _
    // Predicated region
    $region50: #{tpu_custom_call.1} parent=1 // pred_check
      _
    $region51: #{tpu_custom_call.1} parent=1 // pred_check_branch
      %128 = sbr.rel (0) target = $region53
    $region52: #{tpu_custom_call.1} parent=1 // pred_region
      %129 = dma.done [#allocation7], 96
    $region53: #{tpu_custom_call.1} parent=1 // pred_fallthru
      _
    // Predicated region
    $region54: #{tpu_custom_call.1} parent=1 // pred_check
      _
    $region55: #{tpu_custom_call.1} parent=1 // pred_check_branch
      %131 = sbr.rel (0) target = $region57
    $region56: #{tpu_custom_call.1} parent=1 // pred_region
      %132 = dma.done [#allocation10], 8192
    $region57: #{tpu_custom_call.1} parent=1 // pred_fallthru
      _
    // Predicated region
    $region58: #{tpu_custom_call.1} parent=1 // pred_check
      _
    $region59: #{tpu_custom_call.1} parent=1 // pred_check_branch
      %134 = sbr.rel (0) target = $region61
    $region60: #{tpu_custom_call.1} parent=1 // pred_region
      %135 = dma.done [#allocation10], 16
    $region61: #{tpu_custom_call.1} parent=1 // pred_fallthru
      _
    // Predicated region
    $region62: #{tpu_custom_call.1} parent=1 // pred_check
      _
    $region63: #{tpu_custom_call.1} parent=1 // pred_check_branch
      %137 = sbr.rel (0) target = $region65
    $region64: #{tpu_custom_call.1} parent=1 // pred_region
      %138 = dma.done [#allocation13], 2048
    $region65: #{tpu_custom_call.1} parent=1 // pred_fallthru
      _
    // Predicated region
    $region66: #{tpu_custom_call.1} parent=1 // pred_check
      _
    $region67: #{tpu_custom_call.1} parent=1 // pred_check_branch
      %140 = sbr.rel (0) target = $region69
    $region68: #{tpu_custom_call.1} parent=1 // pred_region
      %141 = dma.done [#allocation13], 4096
    $region69: #{tpu_custom_call.1} parent=1 // pred_fallthru
      _
    // Predicated region
    $region70: #{tpu_custom_call.1} parent=1 // pred_check
      _
    $region71: #{tpu_custom_call.1} parent=1 // pred_check_branch
      %143 = sbr.rel (0) target = $region73
    $region72: #{tpu_custom_call.1} parent=1 // pred_region
      %144 = dma.done [#allocation16], 16
    $region73: #{tpu_custom_call.1} parent=1 // pred_fallthru
      _
    // Predicated region
    $region74: #{tpu_custom_call.1} parent=1 // pred_check
      _
    $region75: #{tpu_custom_call.1} parent=1 // pred_check_branch
      %146 = sbr.rel (0) target = $region77
    $region76: #{tpu_custom_call.1} parent=1 // pred_region
      %147 = dma.done [#allocation16], 16
    $region77: #{tpu_custom_call.1} parent=1 // pred_fallthru
      _
    %v148 = vld [vmem:[#allocation3] sm:$0xff]
    %v149 = vld [vmem:[#allocation6] sm:$0xff]
    %v150 = vld [vmem:[#allocation6 + $0x8] sm:$0xff]
    %v151 = vld [vmem:[#allocation6 + $0x10] sm:$0xff]
    %v152 = vld [vmem:[#allocation6 + $0x18] sm:$0xff]
    %v153 = vld [vmem:[#allocation6 + $0x20] sm:$0xff]
    %v154 = vld [vmem:[#allocation6 + $0x28] sm:$0xff]
    %v155 = vld [vmem:[#allocation8] sm:$0x3f]
    %v157 = vlaneseq
    %v158 = vshrl.u32 %v157, 7
    %v159 = vsub.s32 0, %v158
    %v160 = vrot.slane %v155, %v159
    %v161 = vlaneseq
    %v162 = vshrl.u32 %v161, 7
    %v163 = vsub.s32 1, %v162
    %v164 = vrot.slane %v155, %v163
    %v165 = vlaneseq
    %v166 = vshrl.u32 %v165, 7
    %v167 = vsub.s32 2, %v166
    %v168 = vrot.slane %v155, %v167
    %v169 = vlaneseq
    %v170 = vshrl.u32 %v169, 7
    %v171 = vsub.s32 3, %v170
    %v172 = vrot.slane %v155, %v171
    %v173 = vlaneseq
    %v174 = vshrl.u32 %v173, 7
    %v175 = vsub.s32 4, %v174
    %v176 = vrot.slane %v155, %v175
    %v177 = vlaneseq
    %v178 = vshrl.u32 %v177, 7
    %v179 = vsub.s32 5, %v178
    %v180 = vrot.slane %v155, %v179
    %vm187 = vcmask 64512
    %v189 = vsel %vm187, %v148, 0
    %191 = vmatprep.subr.mxu0 %v150
    %192 = vmatpush1.msra.mxu0 %v149
    %193 = vmatprep.subr.mxu0 0.0
    %194 = vmatpush1.msra.mxu0 0.0
    %195 = vmatprep.subr.mxu0 0.0
    %196 = vmatpush1.msra.mxu0 0.0
    %197 = vmatprep.subr.mxu0 0.0
    %198 = vmatpush1.msra.mxu0 0.0
    %199 = vmatprep.subr.mxu0 0.0
    %200 = vmatpush1.msra.mxu0 0.0
    %201 = vmatprep.subr.mxu0 0.0
    %202 = vmatpush1.msra.mxu0 0.0
    %203 = vmatprep.subr.mxu0 0.0
    %204 = vmatpush1.msra.mxu0 0.0
    %205 = vmatprep.subr.mxu0 0.0
    %206 = vmatpush1.msra.mxu0 0.0
    %207 = vmatprep.subr.mxu0 0.0
    %208 = vmatpush1.msra.mxu0 0.0
    %209 = vmatprep.subr.mxu0 0.0
    %210 = vmatpush1.msra.mxu0 0.0
    %211 = vmatprep.subr.mxu0 0.0
    %212 = vmatpush1.msra.mxu0 0.0
    %213 = vmatprep.subr.mxu0 0.0
    %214 = vmatpush1.msra.mxu0 0.0
    %215 = vmatprep.subr.mxu0 0.0
    %216 = vmatpush1.msra.mxu0 0.0
    %217 = vmatprep.subr.mxu0 0.0
    %218 = vmatpush1.msra.mxu0 0.0
    %219 = vmatprep.subr.mxu0 0.0
    %220 = vmatpush1.msra.mxu0 0.0
    %221 = vmatprep.subr.mxu0 0.0
    %222 = vmatpush1.msra.mxu0 0.0
    %223 = vmatprep.subr.mxu0 0.0
    %224 = vmatpush1.msra.mxu0 0.0
    %225 = vmatprep.subr.mxu0 0.0
    %226 = vmatpush1.msra.mxu0 0.0
    %227 = vmatprep.subr.mxu0 0.0
    %228 = vmatpush1.msra.mxu0 0.0
    %229 = vmatprep.subr.mxu0 0.0
    %230 = vmatpush1.msra.mxu0 0.0
    %231 = vmatprep.subr.mxu0 0.0
    %232 = vmatpush1.msra.mxu0 0.0
    %233 = vmatprep.subr.mxu0 0.0
    %234 = vmatpush1.msra.mxu0 0.0
    %235 = vmatprep.subr.mxu0 0.0
    %236 = vmatpush1.msra.mxu0 0.0
    %237 = vmatprep.subr.mxu0 0.0
    %238 = vmatpush1.msra.mxu0 0.0
    %239 = vmatprep.subr.mxu0 0.0
    %240 = vmatpush1.msra.mxu0 0.0
    %241 = vmatprep.subr.mxu0 0.0
    %242 = vmatpush1.msra.mxu0 0.0
    %243 = vmatprep.subr.mxu0 0.0
    %244 = vmatpush1.msra.mxu0 0.0
    %245 = vmatprep.subr.mxu0 0.0
    %246 = vmatpush1.msra.mxu0 0.0
    %247 = vmatprep.subr.mxu0 0.0
    %248 = vmatpush1.msra.mxu0 0.0
    %249 = vmatprep.subr.mxu0 0.0
    %250 = vmatpush1.msra.mxu0 0.0
    %251 = vmatprep.subr.mxu0 0.0
    %252 = vmatpush1.msra.mxu0 0.0
    %253 = vmatprep.subr.mxu0 0.0
    %254 = vmatpush1.msra.mxu0 0.0
    %255 = vmatprep.mubr.f32.mxu0 0.0
    %256 = vmatmul.mubr.f32.gmra.mrb[0].mxu0 %v189
    %v257 = vpop.f32.mrb[0].mxu0
    %v258 = vadd.f32 %v160, %v257
    %v259 = vpop.f32.mrb[0].mxu0
    %v260 = vadd.f32 %v164, %v259
    %261 = vdwg.mxu0
    %262 = vmatprep.subr.mxu0 %v152
    %263 = vmatpush1.msra.mxu0 %v151
    %264 = vmatprep.subr.mxu0 0.0
    %265 = vmatpush1.msra.mxu0 0.0
    %266 = vmatprep.subr.mxu0 0.0
    %267 = vmatpush1.msra.mxu0 0.0
    %268 = vmatprep.subr.mxu0 0.0
    %269 = vmatpush1.msra.mxu0 0.0
    %270 = vmatprep.subr.mxu0 0.0
    %271 = vmatpush1.msra.mxu0 0.0
    %272 = vmatprep.subr.mxu0 0.0
    %273 = vmatpush1.msra.mxu0 0.0
    %274 = vmatprep.subr.mxu0 0.0
    %275 = vmatpush1.msra.mxu0 0.0
    %276 = vmatprep.subr.mxu0 0.0
    %277 = vmatpush1.msra.mxu0 0.0
    %278 = vmatprep.subr.mxu0 0.0
    %279 = vmatpush1.msra.mxu0 0.0
    %280 = vmatprep.subr.mxu0 0.0
    %281 = vmatpush1.msra.mxu0 0.0
    %282 = vmatprep.subr.mxu0 0.0
    %283 = vmatpush1.msra.mxu0 0.0
    %284 = vmatprep.subr.mxu0 0.0
    %285 = vmatpush1.msra.mxu0 0.0
    %286 = vmatprep.subr.mxu0 0.0
    %287 = vmatpush1.msra.mxu0 0.0
    %288 = vmatprep.subr.mxu0 0.0
    %289 = vmatpush1.msra.mxu0 0.0
    %290 = vmatprep.subr.mxu0 0.0
    %291 = vmatpush1.msra.mxu0 0.0
    %292 = vmatprep.subr.mxu0 0.0
    %293 = vmatpush1.msra.mxu0 0.0
    %294 = vmatprep.subr.mxu0 0.0
    %295 = vmatpush1.msra.mxu0 0.0
    %296 = vmatprep.subr.mxu0 0.0
    %297 = vmatpush1.msra.mxu0 0.0
    %298 = vmatprep.subr.mxu0 0.0
    %299 = vmatpush1.msra.mxu0 0.0
    %300 = vmatprep.subr.mxu0 0.0
    %301 = vmatpush1.msra.mxu0 0.0
    %302 = vmatprep.subr.mxu0 0.0
    %303 = vmatpush1.msra.mxu0 0.0
    %304 = vmatprep.subr.mxu0 0.0
    %305 = vmatpush1.msra.mxu0 0.0
    %306 = vmatprep.subr.mxu0 0.0
    %307 = vmatpush1.msra.mxu0 0.0
    %308 = vmatprep.subr.mxu0 0.0
    %309 = vmatpush1.msra.mxu0 0.0
    %310 = vmatprep.subr.mxu0 0.0
    %311 = vmatpush1.msra.mxu0 0.0
    %312 = vmatprep.subr.mxu0 0.0
    %313 = vmatpush1.msra.mxu0 0.0
    %314 = vmatprep.subr.mxu0 0.0
    %315 = vmatpush1.msra.mxu0 0.0
    %316 = vmatprep.subr.mxu0 0.0
    %317 = vmatpush1.msra.mxu0 0.0
    %318 = vmatprep.subr.mxu0 0.0
    %319 = vmatpush1.msra.mxu0 0.0
    %320 = vmatprep.subr.mxu0 0.0
    %321 = vmatpush1.msra.mxu0 0.0
    %322 = vmatprep.subr.mxu0 0.0
    %323 = vmatpush1.msra.mxu0 0.0
    %324 = vmatprep.subr.mxu0 0.0
    %325 = vmatpush1.msra.mxu0 0.0
    %326 = vmatprep.mubr.f32.mxu0 0.0
    %327 = vmatmul.mubr.f32.gmra.mrb[0].mxu0 %v189
    %v328 = vpop.f32.mrb[0].mxu0
    %v329 = vadd.f32 %v168, %v328
    %v330 = vpop.f32.mrb[0].mxu0
    %v331 = vadd.f32 %v172, %v330
    %332 = vdwg.mxu0
    %333 = vmatprep.subr.mxu0 %v154
    %334 = vmatpush1.msra.mxu0 %v153
    %335 = vmatprep.subr.mxu0 0.0
    %336 = vmatpush1.msra.mxu0 0.0
    %337 = vmatprep.subr.mxu0 0.0
    %338 = vmatpush1.msra.mxu0 0.0
    %339 = vmatprep.subr.mxu0 0.0
    %340 = vmatpush1.msra.mxu0 0.0
    %341 = vmatprep.subr.mxu0 0.0
    %342 = vmatpush1.msra.mxu0 0.0
    %343 = vmatprep.subr.mxu0 0.0
    %344 = vmatpush1.msra.mxu0 0.0
    %345 = vmatprep.subr.mxu0 0.0
    %346 = vmatpush1.msra.mxu0 0.0
    %347 = vmatprep.subr.mxu0 0.0
    %348 = vmatpush1.msra.mxu0 0.0
    %349 = vmatprep.subr.mxu0 0.0
    %350 = vmatpush1.msra.mxu0 0.0
    %351 = vmatprep.subr.mxu0 0.0
    %352 = vmatpush1.msra.mxu0 0.0
    %353 = vmatprep.subr.mxu0 0.0
    %354 = vmatpush1.msra.mxu0 0.0
    %355 = vmatprep.subr.mxu0 0.0
    %356 = vmatpush1.msra.mxu0 0.0
    %357 = vmatprep.subr.mxu0 0.0
    %358 = vmatpush1.msra.mxu0 0.0
    %359 = vmatprep.subr.mxu0 0.0
    %360 = vmatpush1.msra.mxu0 0.0
    %361 = vmatprep.subr.mxu0 0.0
    %362 = vmatpush1.msra.mxu0 0.0
    %363 = vmatprep.subr.mxu0 0.0
    %364 = vmatpush1.msra.mxu0 0.0
    %365 = vmatprep.subr.mxu0 0.0
    %366 = vmatpush1.msra.mxu0 0.0
    %367 = vmatprep.subr.mxu0 0.0
    %368 = vmatpush1.msra.mxu0 0.0
    %369 = vmatprep.subr.mxu0 0.0
    %370 = vmatpush1.msra.mxu0 0.0
    %371 = vmatprep.subr.mxu0 0.0
    %372 = vmatpush1.msra.mxu0 0.0
    %373 = vmatprep.subr.mxu0 0.0
    %374 = vmatpush1.msra.mxu0 0.0
    %375 = vmatprep.subr.mxu0 0.0
    %376 = vmatpush1.msra.mxu0 0.0
    %377 = vmatprep.subr.mxu0 0.0
    %378 = vmatpush1.msra.mxu0 0.0
    %379 = vmatprep.subr.mxu0 0.0
    %380 = vmatpush1.msra.mxu0 0.0
    %381 = vmatprep.subr.mxu0 0.0
    %382 = vmatpush1.msra.mxu0 0.0
    %383 = vmatprep.subr.mxu0 0.0
    %384 = vmatpush1.msra.mxu0 0.0
    %385 = vmatprep.subr.mxu0 0.0
    %386 = vmatpush1.msra.mxu0 0.0
    %387 = vmatprep.subr.mxu0 0.0
    %388 = vmatpush1.msra.mxu0 0.0
    %389 = vmatprep.subr.mxu0 0.0
    %390 = vmatpush1.msra.mxu0 0.0
    %391 = vmatprep.subr.mxu0 0.0
    %392 = vmatpush1.msra.mxu0 0.0
    %393 = vmatprep.subr.mxu0 0.0
    %394 = vmatpush1.msra.mxu0 0.0
    %395 = vmatprep.subr.mxu0 0.0
    %396 = vmatpush1.msra.mxu0 0.0
    %397 = vmatprep.mubr.f32.mxu0 0.0
    %398 = vmatmul.mubr.f32.gmra.mrb[0].mxu0 %v189
    %v399 = vpop.f32.mrb[0].mxu0
    %v400 = vadd.f32 %v176, %v399
    %v401 = vpop.f32.mrb[0].mxu0
    %v402 = vadd.f32 %v180, %v401
    %403 = vdwg.mxu0
    %v404 = vmax.f32 %v258, 0.0
    %v405 = vmax.f32 %v260, 0.0
    %v406 = vmax.f32 %v329, 0.0
    %v407 = vmax.f32 %v331, 0.0
    %v408 = vmax.f32 %v400, 0.0
    %v409 = vmax.f32 %v402, 0.0
    %v410 = vld [vmem:[#allocation9] sm:$0xff]
    %v411 = vld [vmem:[#allocation9 + $0x8] sm:$0xff]
    %v412 = vld [vmem:[#allocation9 + $0x10] sm:$0xff]
    %v413 = vld [vmem:[#allocation9 + $0x18] sm:$0xff]
    %v414 = vld [vmem:[#allocation9 + $0x20] sm:$0xff]
    %v415 = vld [vmem:[#allocation9 + $0x28] sm:$0xff]
    %v416 = vld [vmem:[#allocation9 + $0x30] sm:$0xff]
    %v417 = vld [vmem:[#allocation9 + $0x38] sm:$0xff]
    %v418 = vld [vmem:[#allocation9 + $0x40] sm:$0xff]
    %v419 = vld [vmem:[#allocation9 + $0x48] sm:$0xff]
    %v420 = vld [vmem:[#allocation9 + $0x50] sm:$0xff]
    %v421 = vld [vmem:[#allocation9 + $0x58] sm:$0xff]
    %v422 = vld [vmem:[#allocation9 + $0x60] sm:$0xff]
    %v423 = vld [vmem:[#allocation9 + $0x68] sm:$0xff]
    %v424 = vld [vmem:[#allocation9 + $0x70] sm:$0xff]
    %v425 = vld [vmem:[#allocation9 + $0x78] sm:$0xff]
    %v426 = vld [vmem:[#allocation9 + $0x80] sm:$0xff]
    %v427 = vld [vmem:[#allocation9 + $0x88] sm:$0xff]
    %v428 = vld [vmem:[#allocation9 + $0x90] sm:$0xff]
    %v429 = vld [vmem:[#allocation9 + $0x98] sm:$0xff]
    %v430 = vld [vmem:[#allocation9 + $0xa0] sm:$0xff]
    %v431 = vld [vmem:[#allocation9 + $0xa8] sm:$0xff]
    %v432 = vld [vmem:[#allocation9 + $0xb0] sm:$0xff]
    %v433 = vld [vmem:[#allocation9 + $0xb8] sm:$0xff]
    %v434 = vld [vmem:[#allocation9 + $0xc0] sm:$0xff]
    %v435 = vld [vmem:[#allocation9 + $0xc8] sm:$0xff]
    %v436 = vld [vmem:[#allocation9 + $0xd0] sm:$0xff]
    %v437 = vld [vmem:[#allocation9 + $0xd8] sm:$0xff]
    %v438 = vld [vmem:[#allocation9 + $0xe0] sm:$0xff]
    %v439 = vld [vmem:[#allocation9 + $0xe8] sm:$0xff]
    %v440 = vld [vmem:[#allocation9 + $0xf0] sm:$0xff]
    %v441 = vld [vmem:[#allocation9 + $0xf8] sm:$0xff]
    %v442 = vld [vmem:[#allocation9 + $0x100] sm:$0xff]
    %v443 = vld [vmem:[#allocation9 + $0x108] sm:$0xff]
    %v444 = vld [vmem:[#allocation9 + $0x110] sm:$0xff]
    %v445 = vld [vmem:[#allocation9 + $0x118] sm:$0xff]
    %v446 = vld [vmem:[#allocation9 + $0x120] sm:$0xff]
    %v447 = vld [vmem:[#allocation9 + $0x128] sm:$0xff]
    %v448 = vld [vmem:[#allocation9 + $0x130] sm:$0xff]
    %v449 = vld [vmem:[#allocation9 + $0x138] sm:$0xff]
    %v450 = vld [vmem:[#allocation9 + $0x140] sm:$0xff]
    %v451 = vld [vmem:[#allocation9 + $0x148] sm:$0xff]
    %v452 = vld [vmem:[#allocation9 + $0x150] sm:$0xff]
    %v453 = vld [vmem:[#allocation9 + $0x158] sm:$0xff]
    %v454 = vld [vmem:[#allocation9 + $0x160] sm:$0xff]
    %v455 = vld [vmem:[#allocation9 + $0x168] sm:$0xff]
    %v456 = vld [vmem:[#allocation9 + $0x170] sm:$0xff]
    %v457 = vld [vmem:[#allocation9 + $0x178] sm:$0xff]
    %v458 = vld [vmem:[#allocation9 + $0x180] sm:$0xff]
    %v459 = vld [vmem:[#allocation9 + $0x188] sm:$0xff]
    %v460 = vld [vmem:[#allocation9 + $0x190] sm:$0xff]
    %v461 = vld [vmem:[#allocation9 + $0x198] sm:$0xff]
    %v462 = vld [vmem:[#allocation9 + $0x1a0] sm:$0xff]
    %v463 = vld [vmem:[#allocation9 + $0x1a8] sm:$0xff]
    %v464 = vld [vmem:[#allocation9 + $0x1b0] sm:$0xff]
    %v465 = vld [vmem:[#allocation9 + $0x1b8] sm:$0xff]
    %v466 = vld [vmem:[#allocation9 + $0x1c0] sm:$0xff]
    %v467 = vld [vmem:[#allocation9 + $0x1c8] sm:$0xff]
    %v468 = vld [vmem:[#allocation9 + $0x1d0] sm:$0xff]
    %v469 = vld [vmem:[#allocation9 + $0x1d8] sm:$0xff]
    %v470 = vld [vmem:[#allocation9 + $0x1e0] sm:$0xff]
    %v471 = vld [vmem:[#allocation9 + $0x1e8] sm:$0xff]
    %v472 = vld [vmem:[#allocation9 + $0x1f0] sm:$0xff]
    %v473 = vld [vmem:[#allocation9 + $0x1f8] sm:$0xff]
    %v474 = vld [vmem:[#allocation11] sm:$0x1]
    %v476 = vlaneseq
    %v477 = vshrl.u32 %v476, 7
    %v478 = vsub.s32 0, %v477
    %v479 = vrot.slane %v474, %v478
    %481 = vmatprep.subr.mxu0 0.0
    %482 = vmatpush1.msra.mxu0 %v410
    %483 = vmatprep.subr.mxu0 0.0
    %484 = vmatpush1.msra.mxu0 %v411
    %485 = vmatprep.subr.mxu0 0.0
    %486 = vmatpush1.msra.mxu0 %v412
    %487 = vmatprep.subr.mxu0 0.0
    %488 = vmatpush1.msra.mxu0 %v413
    %489 = vmatprep.subr.mxu0 0.0
    %490 = vmatpush1.msra.mxu0 %v414
    %491 = vmatprep.subr.mxu0 0.0
    %492 = vmatpush1.msra.mxu0 %v415
    %493 = vmatprep.subr.mxu0 0.0
    %494 = vmatpush1.msra.mxu0 %v416
    %495 = vmatprep.subr.mxu0 0.0
    %496 = vmatpush1.msra.mxu0 %v417
    %497 = vmatprep.subr.mxu0 0.0
    %498 = vmatpush1.msra.mxu0 %v418
    %499 = vmatprep.subr.mxu0 0.0
    %500 = vmatpush1.msra.mxu0 %v419
    %501 = vmatprep.subr.mxu0 0.0
    %502 = vmatpush1.msra.mxu0 %v420
    %503 = vmatprep.subr.mxu0 0.0
    %504 = vmatpush1.msra.mxu0 %v421
    %505 = vmatprep.subr.mxu0 0.0
    %506 = vmatpush1.msra.mxu0 %v422
    %507 = vmatprep.subr.mxu0 0.0
    %508 = vmatpush1.msra.mxu0 %v423
    %509 = vmatprep.subr.mxu0 0.0
    %510 = vmatpush1.msra.mxu0 %v424
    %511 = vmatprep.subr.mxu0 0.0
    %512 = vmatpush1.msra.mxu0 %v425
    %513 = vmatprep.subr.mxu0 0.0
    %514 = vmatpush1.msra.mxu0 %v426
    %515 = vmatprep.subr.mxu0 0.0
    %516 = vmatpush1.msra.mxu0 %v427
    %517 = vmatprep.subr.mxu0 0.0
    %518 = vmatpush1.msra.mxu0 %v428
    %519 = vmatprep.subr.mxu0 0.0
    %520 = vmatpush1.msra.mxu0 %v429
    %521 = vmatprep.subr.mxu0 0.0
    %522 = vmatpush1.msra.mxu0 %v430
    %523 = vmatprep.subr.mxu0 0.0
    %524 = vmatpush1.msra.mxu0 %v431
    %525 = vmatprep.subr.mxu0 0.0
    %526 = vmatpush1.msra.mxu0 %v432
    %527 = vmatprep.subr.mxu0 0.0
    %528 = vmatpush1.msra.mxu0 %v433
    %529 = vmatprep.subr.mxu0 0.0
    %530 = vmatpush1.msra.mxu0 %v434
    %531 = vmatprep.subr.mxu0 0.0
    %532 = vmatpush1.msra.mxu0 %v435
    %533 = vmatprep.subr.mxu0 0.0
    %534 = vmatpush1.msra.mxu0 %v436
    %535 = vmatprep.subr.mxu0 0.0
    %536 = vmatpush1.msra.mxu0 %v437
    %537 = vmatprep.subr.mxu0 0.0
    %538 = vmatpush1.msra.mxu0 %v438
    %539 = vmatprep.subr.mxu0 0.0
    %540 = vmatpush1.msra.mxu0 %v439
    %541 = vmatprep.subr.mxu0 0.0
    %542 = vmatpush1.msra.mxu0 %v440
    %543 = vmatprep.subr.mxu0 0.0
    %544 = vmatpush1.msra.mxu0 %v441
    %545 = vmatprep.mubr.f32.mxu0 %v405
    %546 = vmatmul.mubr.f32.gmra.mrb[0].mxu0 %v404
    %v547 = vpop.f32.mrb[0].mxu0
    %v548 = vadd.f32 %v479, %v547
    %v549 = vpop.f32.mrb[0].mxu0
    %550 = vdwg.mxu0
    %551 = vmatprep.subr.mxu0 0.0
    %552 = vmatpush1.msra.mxu0 %v442
    %553 = vmatprep.subr.mxu0 0.0
    %554 = vmatpush1.msra.mxu0 %v443
    %555 = vmatprep.subr.mxu0 0.0
    %556 = vmatpush1.msra.mxu0 %v444
    %557 = vmatprep.subr.mxu0 0.0
    %558 = vmatpush1.msra.mxu0 %v445
    %559 = vmatprep.subr.mxu0 0.0
    %560 = vmatpush1.msra.mxu0 %v446
    %561 = vmatprep.subr.mxu0 0.0
    %562 = vmatpush1.msra.mxu0 %v447
    %563 = vmatprep.subr.mxu0 0.0
    %564 = vmatpush1.msra.mxu0 %v448
    %565 = vmatprep.subr.mxu0 0.0
    %566 = vmatpush1.msra.mxu0 %v449
    %567 = vmatprep.subr.mxu0 0.0
    %568 = vmatpush1.msra.mxu0 %v450
    %569 = vmatprep.subr.mxu0 0.0
    %570 = vmatpush1.msra.mxu0 %v451
    %571 = vmatprep.subr.mxu0 0.0
    %572 = vmatpush1.msra.mxu0 %v452
    %573 = vmatprep.subr.mxu0 0.0
    %574 = vmatpush1.msra.mxu0 %v453
    %575 = vmatprep.subr.mxu0 0.0
    %576 = vmatpush1.msra.mxu0 %v454
    %577 = vmatprep.subr.mxu0 0.0
    %578 = vmatpush1.msra.mxu0 %v455
    %579 = vmatprep.subr.mxu0 0.0
    %580 = vmatpush1.msra.mxu0 %v456
    %581 = vmatprep.subr.mxu0 0.0
    %582 = vmatpush1.msra.mxu0 %v457
    %583 = vmatprep.subr.mxu0 0.0
    %584 = vmatpush1.msra.mxu0 %v458
    %585 = vmatprep.subr.mxu0 0.0
    %586 = vmatpush1.msra.mxu0 %v459
    %587 = vmatprep.subr.mxu0 0.0
    %588 = vmatpush1.msra.mxu0 %v460
    %589 = vmatprep.subr.mxu0 0.0
    %590 = vmatpush1.msra.mxu0 %v461
    %591 = vmatprep.subr.mxu0 0.0
    %592 = vmatpush1.msra.mxu0 %v462
    %593 = vmatprep.subr.mxu0 0.0
    %594 = vmatpush1.msra.mxu0 %v463
    %595 = vmatprep.subr.mxu0 0.0
    %596 = vmatpush1.msra.mxu0 %v464
    %597 = vmatprep.subr.mxu0 0.0
    %598 = vmatpush1.msra.mxu0 %v465
    %599 = vmatprep.subr.mxu0 0.0
    %600 = vmatpush1.msra.mxu0 %v466
    %601 = vmatprep.subr.mxu0 0.0
    %602 = vmatpush1.msra.mxu0 %v467
    %603 = vmatprep.subr.mxu0 0.0
    %604 = vmatpush1.msra.mxu0 %v468
    %605 = vmatprep.subr.mxu0 0.0
    %606 = vmatpush1.msra.mxu0 %v469
    %607 = vmatprep.subr.mxu0 0.0
    %608 = vmatpush1.msra.mxu0 %v470
    %609 = vmatprep.subr.mxu0 0.0
    %610 = vmatpush1.msra.mxu0 %v471
    %611 = vmatprep.subr.mxu0 0.0
    %612 = vmatpush1.msra.mxu0 %v472
    %613 = vmatprep.subr.mxu0 0.0
    %614 = vmatpush1.msra.mxu0 %v473
    %615 = vmatprep.mubr.f32.mxu0 %v407
    %616 = vmatmul.mubr.f32.gmra.mrb[0].mxu0 %v406
    %v617 = vpop.f32.mrb[0].mxu0
    %v618 = vadd.f32 %v548, %v617
    %v619 = vpop.f32.mrb[0].mxu0
    %620 = vdwg.mxu0
    %v621 = vmax.f32 %v618, 0.0
    %v622 = vld [vmem:[#allocation12] sm:$0xff]
    %v623 = vld [vmem:[#allocation12 + $0x8] sm:$0xff]
    %v624 = vld [vmem:[#allocation12 + $0x10] sm:$0xff]
    %v625 = vld [vmem:[#allocation12 + $0x18] sm:$0xff]
    %v626 = vld [vmem:[#allocation12 + $0x20] sm:$0xff]
    %v627 = vld [vmem:[#allocation12 + $0x28] sm:$0xff]
    %v628 = vld [vmem:[#allocation12 + $0x30] sm:$0xff]
    %v629 = vld [vmem:[#allocation12 + $0x38] sm:$0xff]
    %v630 = vld [vmem:[#allocation12 + $0x40] sm:$0xff]
    %v631 = vld [vmem:[#allocation12 + $0x48] sm:$0xff]
    %v632 = vld [vmem:[#allocation12 + $0x50] sm:$0xff]
    %v633 = vld [vmem:[#allocation12 + $0x58] sm:$0xff]
    %v634 = vld [vmem:[#allocation12 + $0x60] sm:$0xff]
    %v635 = vld [vmem:[#allocation12 + $0x68] sm:$0xff]
    %v636 = vld [vmem:[#allocation12 + $0x70] sm:$0xff]
    %v637 = vld [vmem:[#allocation12 + $0x78] sm:$0xff]
    %v638 = vld [vmem:[#allocation14] sm:$0xff]
    %v639 = vld [vmem:[#allocation14 + $0x8] sm:$0xff]
    %v640 = vld [vmem:[#allocation14 + $0x10] sm:$0xff]
    %v641 = vld [vmem:[#allocation14 + $0x18] sm:$0xff]
    %v642 = vld [vmem:[#allocation14 + $0x20] sm:$0xff]
    %v643 = vld [vmem:[#allocation14 + $0x28] sm:$0xff]
    %v644 = vld [vmem:[#allocation14 + $0x30] sm:$0xff]
    %v645 = vld [vmem:[#allocation14 + $0x38] sm:$0xff]
    %v646 = vld [vmem:[#allocation14 + $0x40] sm:$0xff]
    %v647 = vld [vmem:[#allocation14 + $0x48] sm:$0xff]
    %v648 = vld [vmem:[#allocation14 + $0x50] sm:$0xff]
    %v649 = vld [vmem:[#allocation14 + $0x58] sm:$0xff]
    %v650 = vld [vmem:[#allocation14 + $0x60] sm:$0xff]
    %v651 = vld [vmem:[#allocation14 + $0x68] sm:$0xff]
    %v652 = vld [vmem:[#allocation14 + $0x70] sm:$0xff]
    %v653 = vld [vmem:[#allocation14 + $0x78] sm:$0xff]
    %v654 = vld [vmem:[#allocation14 + $0x80] sm:$0xff]
    %v655 = vld [vmem:[#allocation14 + $0x88] sm:$0xff]
    %v656 = vld [vmem:[#allocation14 + $0x90] sm:$0xff]
    %v657 = vld [vmem:[#allocation14 + $0x98] sm:$0xff]
    %v658 = vld [vmem:[#allocation14 + $0xa0] sm:$0xff]
    %v659 = vld [vmem:[#allocation14 + $0xa8] sm:$0xff]
    %v660 = vld [vmem:[#allocation14 + $0xb0] sm:$0xff]
    %v661 = vld [vmem:[#allocation14 + $0xb8] sm:$0xff]
    %v662 = vld [vmem:[#allocation14 + $0xc0] sm:$0xff]
    %v663 = vld [vmem:[#allocation14 + $0xc8] sm:$0xff]
    %v664 = vld [vmem:[#allocation14 + $0xd0] sm:$0xff]
    %v665 = vld [vmem:[#allocation14 + $0xd8] sm:$0xff]
    %v666 = vld [vmem:[#allocation14 + $0xe0] sm:$0xff]
    %v667 = vld [vmem:[#allocation14 + $0xe8] sm:$0xff]
    %v668 = vld [vmem:[#allocation14 + $0xf0] sm:$0xff]
    %v669 = vld [vmem:[#allocation14 + $0xf8] sm:$0xff]
    %670 = vmatprep.subr.mxu0 0.0
    %671 = vmatpush1.msra.mxu0 %v638
    %672 = vmatprep.subr.mxu0 0.0
    %673 = vmatpush1.msra.mxu0 %v639
    %674 = vmatprep.subr.mxu0 0.0
    %675 = vmatpush1.msra.mxu0 %v640
    %676 = vmatprep.subr.mxu0 0.0
    %677 = vmatpush1.msra.mxu0 %v641
    %678 = vmatprep.subr.mxu0 0.0
    %679 = vmatpush1.msra.mxu0 %v642
    %680 = vmatprep.subr.mxu0 0.0
    %681 = vmatpush1.msra.mxu0 %v643
    %682 = vmatprep.subr.mxu0 0.0
    %683 = vmatpush1.msra.mxu0 %v644
    %684 = vmatprep.subr.mxu0 0.0
    %685 = vmatpush1.msra.mxu0 %v645
    %686 = vmatprep.subr.mxu0 0.0
    %687 = vmatpush1.msra.mxu0 %v646
    %688 = vmatprep.subr.mxu0 0.0
    %689 = vmatpush1.msra.mxu0 %v647
    %690 = vmatprep.subr.mxu0 0.0
    %691 = vmatpush1.msra.mxu0 %v648
    %692 = vmatprep.subr.mxu0 0.0
    %693 = vmatpush1.msra.mxu0 %v649
    %694 = vmatprep.subr.mxu0 0.0
    %695 = vmatpush1.msra.mxu0 %v650
    %696 = vmatprep.subr.mxu0 0.0
    %697 = vmatpush1.msra.mxu0 %v651
    %698 = vmatprep.subr.mxu0 0.0
    %699 = vmatpush1.msra.mxu0 %v652
    %700 = vmatprep.subr.mxu0 0.0
    %701 = vmatpush1.msra.mxu0 %v653
    %702 = vmatprep.subr.mxu0 0.0
    %703 = vmatpush1.msra.mxu0 %v654
    %704 = vmatprep.subr.mxu0 0.0
    %705 = vmatpush1.msra.mxu0 %v655
    %706 = vmatprep.subr.mxu0 0.0
    %707 = vmatpush1.msra.mxu0 %v656
    %708 = vmatprep.subr.mxu0 0.0
    %709 = vmatpush1.msra.mxu0 %v657
    %710 = vmatprep.subr.mxu0 0.0
    %711 = vmatpush1.msra.mxu0 %v658
    %712 = vmatprep.subr.mxu0 0.0
    %713 = vmatpush1.msra.mxu0 %v659
    %714 = vmatprep.subr.mxu0 0.0
    %715 = vmatpush1.msra.mxu0 %v660
    %716 = vmatprep.subr.mxu0 0.0
    %717 = vmatpush1.msra.mxu0 %v661
    %718 = vmatprep.subr.mxu0 0.0
    %719 = vmatpush1.msra.mxu0 %v662
    %720 = vmatprep.subr.mxu0 0.0
    %721 = vmatpush1.msra.mxu0 %v663
    %722 = vmatprep.subr.mxu0 0.0
    %723 = vmatpush1.msra.mxu0 %v664
    %724 = vmatprep.subr.mxu0 0.0
    %725 = vmatpush1.msra.mxu0 %v665
    %726 = vmatprep.subr.mxu0 0.0
    %727 = vmatpush1.msra.mxu0 %v666
    %728 = vmatprep.subr.mxu0 0.0
    %729 = vmatpush1.msra.mxu0 %v667
    %730 = vmatprep.subr.mxu0 0.0
    %731 = vmatpush1.msra.mxu0 %v668
    %732 = vmatprep.subr.mxu0 0.0
    %733 = vmatpush1.msra.mxu0 %v669
    %734 = vmatprep.mubr.f32.mxu0 %v409
    %735 = vmatmul.mubr.f32.gmra.mrb[0].mxu0 %v408
    %v736 = vpop.f32.mrb[0].mxu0
    %v737 = vadd.f32 0.0, %v736
    %v738 = vpop.f32.mrb[0].mxu0
    %739 = vdwg.mxu0
    %740 = vmatprep.subr.mxu0 0.0
    %741 = vmatpush1.msra.mxu0 %v622
    %742 = vmatprep.subr.mxu0 0.0
    %743 = vmatpush1.msra.mxu0 %v623
    %744 = vmatprep.subr.mxu0 0.0
    %745 = vmatpush1.msra.mxu0 %v624
    %746 = vmatprep.subr.mxu0 0.0
    %747 = vmatpush1.msra.mxu0 %v625
    %748 = vmatprep.subr.mxu0 0.0
    %749 = vmatpush1.msra.mxu0 %v626
    %750 = vmatprep.subr.mxu0 0.0
    %751 = vmatpush1.msra.mxu0 %v627
    %752 = vmatprep.subr.mxu0 0.0
    %753 = vmatpush1.msra.mxu0 %v628
    %754 = vmatprep.subr.mxu0 0.0
    %755 = vmatpush1.msra.mxu0 %v629
    %756 = vmatprep.subr.mxu0 0.0
    %757 = vmatpush1.msra.mxu0 %v630
    %758 = vmatprep.subr.mxu0 0.0
    %759 = vmatpush1.msra.mxu0 %v631
    %760 = vmatprep.subr.mxu0 0.0
    %761 = vmatpush1.msra.mxu0 %v632
    %762 = vmatprep.subr.mxu0 0.0
    %763 = vmatpush1.msra.mxu0 %v633
    %764 = vmatprep.subr.mxu0 0.0
    %765 = vmatpush1.msra.mxu0 %v634
    %766 = vmatprep.subr.mxu0 0.0
    %767 = vmatpush1.msra.mxu0 %v635
    %768 = vmatprep.subr.mxu0 0.0
    %769 = vmatpush1.msra.mxu0 %v636
    %770 = vmatprep.subr.mxu0 0.0
    %771 = vmatpush1.msra.mxu0 %v637
    %772 = vmatprep.subr.mxu0 0.0
    %773 = vmatpush1.msra.mxu0 0.0
    %774 = vmatprep.subr.mxu0 0.0
    %775 = vmatpush1.msra.mxu0 0.0
    %776 = vmatprep.subr.mxu0 0.0
    %777 = vmatpush1.msra.mxu0 0.0
    %778 = vmatprep.subr.mxu0 0.0
    %779 = vmatpush1.msra.mxu0 0.0
    %780 = vmatprep.subr.mxu0 0.0
    %781 = vmatpush1.msra.mxu0 0.0
    %782 = vmatprep.subr.mxu0 0.0
    %783 = vmatpush1.msra.mxu0 0.0
    %784 = vmatprep.subr.mxu0 0.0
    %785 = vmatpush1.msra.mxu0 0.0
    %786 = vmatprep.subr.mxu0 0.0
    %787 = vmatpush1.msra.mxu0 0.0
    %788 = vmatprep.subr.mxu0 0.0
    %789 = vmatpush1.msra.mxu0 0.0
    %790 = vmatprep.subr.mxu0 0.0
    %791 = vmatpush1.msra.mxu0 0.0
    %792 = vmatprep.subr.mxu0 0.0
    %793 = vmatpush1.msra.mxu0 0.0
    %794 = vmatprep.subr.mxu0 0.0
    %795 = vmatpush1.msra.mxu0 0.0
    %796 = vmatprep.subr.mxu0 0.0
    %797 = vmatpush1.msra.mxu0 0.0
    %798 = vmatprep.subr.mxu0 0.0
    %799 = vmatpush1.msra.mxu0 0.0
    %800 = vmatprep.subr.mxu0 0.0
    %801 = vmatpush1.msra.mxu0 0.0
    %802 = vmatprep.subr.mxu0 0.0
    %803 = vmatpush1.msra.mxu0 0.0
    %804 = vmatprep.mubr.f32.mxu0 0.0
    %805 = vmatmul.mubr.f32.gmra.mrb[0].mxu0 %v621
    %v806 = vpop.f32.mrb[0].mxu0
    %v807 = vadd.f32 %v737, %v806
    %v808 = vpop.f32.mrb[0].mxu0
    %809 = vdwg.mxu0
    %v810 = vld [vmem:[#allocation15] sm:$0x1]
    %v812 = vlaneseq
    %v813 = vshrl.u32 %v812, 7
    %v814 = vsub.s32 0, %v813
    %v815 = vrot.slane %v810, %v814
    %v817 = vadd.f32 %v807, %v815
    %v818 = vmax.f32 %v817, 0.0
    %v819 = vld [vmem:[#allocation17] sm:$0x1]
    %v821 = vlaneseq
    %v822 = vshrl.u32 %v821, 7
    %v823 = vsub.s32 0, %v822
    %v824 = vrot.slane %v819, %v823
    %v826 = vmul.f32 %v818, %v824
    %827 = vadd.xlane.f32.xlu0 %v826
    %v828 = vpop.xlane.xlu0 %827
    %v829 = vld [vmem:[#allocation2] sm:$0x1]
    %v831 = vlaneseq
    %v832 = vshrl.u32 %v831, 7
    %v833 = vsub.s32 0, %v832
    %v834 = vrot.slane %v829, %v833
    %v836 = vadd.f32 %v828, %v834
    %v837 = vsub.f32 0.0, %v836
    %v838 = vmul.f32 %v837, 1.442695
    %v839 = vpow.pop %v838
    %v840 = vadd.f32 %v839, 1.0
    %v841 = vrcp.pop %v840
    %vm842 = vcmask 7168
    %843 = vst.msk [vmem:[#allocation18] sm:$0xff] %vm842, %v841
    // Predicated region
    $region78: #{tpu_custom_call.1} parent=1 // pred_check
      _
    $region79: #{tpu_custom_call.1} parent=1 // pred_check_branch
      %845 = sbr.rel (0) target = $region81
    $region80: #{tpu_custom_call.1} parent=1 // pred_region
      %s847 = ssub.s32 128, 128
      %848 = vsyncadd [#allocation5], %s847
      %s850 = sshll.u32 [#allocation18], 4
      %s851 = int_to_ptr.vmem [resolvable:$true] %s850
      %853 = dma.vmem_to_hbm [thread:$0]  %s851, 128, %s10, [#allocation5]
    $region81: #{tpu_custom_call.1} parent=1 // pred_fallthru
      _
    // Predicated region
    $region82: #{tpu_custom_call.1} parent=1 // pred_check
      _
    $region83: #{tpu_custom_call.1} parent=1 // pred_check_branch
      %855 = sbr.rel (0) target = $region85
    $region84: #{tpu_custom_call.1} parent=1 // pred_region
      %856 = dma.done [#allocation5], 128
    $region85: #{tpu_custom_call.1} parent=1 // pred_fallthru
      _
    %857 = vsyncpa [#allocation4], 1
    %858 = vsyncpa [#allocation7], 1
    %859 = vsyncpa [#allocation10], 1
    %860 = vsyncpa [#allocation13], 1
    %861 = vsyncpa [#allocation16], 1
    %862 = vsyncpa [#allocation5], 1

</llo_original>
